<compile_context>
chip_gen: v5e
topology: v5e:2x2
jax: 0.10.0
libtpu: 0.0.40
codegen_flags: <defaults>
</compile_context>

<pallas_src>
import functools

import jax
import jax.numpy as jnp
from jax.experimental import pallas as pl
from jax.experimental.pallas import tpu as pltpu


def _round_up(x, m):
    return (x + m - 1) // m * m


# ----------------------------------------------------------------------------
# Static layout (pure Python ints, used at trace time)
# ----------------------------------------------------------------------------
def make_layout(in_dim, nb_classes, latent_dim, hidden_dims):
    h0, h1 = hidden_dims
    dcat = latent_dim + nb_classes
    if dcat + 1 > 128:
        raise ValueError("latent_dim + nb_classes must be <= 127 for this lane layout")
    if latent_dim > 127:
        raise ValueError("latent_dim must be <= 127 for this lane layout")

    X_W = _round_up(in_dim + 1, 128)   # x block (+ ones lane carrying the fc1 bias)
    H0_W = _round_up(h0 + 1, 128)      # hidden0 activation block (+ ones lane)
    H1_W = _round_up(h1 + 1, 128)      # hidden1 activation block (+ ones lane)
    R_W = _round_up(in_dim, 128)       # recon output block
    MULV_W = 256                       # [mu 128-block | logvar 128-block]

    # name -> (row_offset, padded_fan_in_rows, padded_fan_out_cols)
    # bias is folded at row == true fan_in (the incoming activation's ones lane).
    wdefs = [
        ("ew1",   X_W,  H0_W),   # encoder fc1
        ("ew2",   H0_W, H1_W),   # encoder fc2
        ("wmulv", H1_W, MULV_W), # fused fc_mu | fc_logvar
        ("dw1",   128,  H1_W),   # decoder fc1 (consumes [z | label | 1] block)
        ("dw2",   H1_W, H0_W),   # decoder fc2
        ("dwo",   H0_W, R_W),    # decoder output
    ]
    w = {}
    off = 0
    for name, k, n in wdefs:
        w[name] = (off, k, n)
        off += k
    W_ROWS = off
    W_COLS = max(n for _, _, n in wdefs)

    return dict(
        w=w, w_shape=(W_ROWS, W_COLS),
        in_dim=in_dim, nb_classes=nb_classes, latent_dim=latent_dim,
        h0=h0, h1=h1, dcat=dcat,
        X_W=X_W, H0_W=H0_W, H1_W=H1_W, R_W=R_W,
        IN_W=X_W + 128, OUT_W=R_W + 256,
    )


# ----------------------------------------------------------------------------
# Host-side parameter packing (done once, outside the hot path) -> ONE bf16 slab
# ----------------------------------------------------------------------------
def pack_params(params, layout):
    L = layout
    h0, h1, latent = L["h0"], L["h1"], L["latent_dim"]
    slab = jnp.zeros(L["w_shape"], jnp.float32)

    def put(slab, name, weight, bias, ones_col=None):
        off, _, _ = L["w"][name]
        fi, fo = weight.shape
        slab = slab.at[off:off + fi, :fo].set(weight)
        slab = slab.at[off + fi, :fo].set(bias)          # folded bias row
        if ones_col is not None:                         # keep ones lane alive downstream
            slab = slab.at[off + fi, ones_col].set(1.0)
        return slab

    slab = put(slab, "ew1", params["ew1"], params["eb1"], ones_col=h0)
    slab = put(slab, "ew2", params["ew2"], params["eb2"], ones_col=h1)

    # fused mu|logvar: mu -> column block 0, logvar -> column block 1
    off, _, _ = L["w"]["wmulv"]
    slab = slab.at[off:off + h1, :latent].set(params["wmu"])
    slab = slab.at[off:off + h1, 128:128 + latent].set(params["wlv"])
    slab = slab.at[off + h1, :latent].set(params["bmu"])
    slab = slab.at[off + h1, 128:128 + latent].set(params["blv"])

    slab = put(slab, "dw1", params["dw1"], params["db1"], ones_col=h1)
    slab = put(slab, "dw2", params["dw2"], params["db2"], ones_col=h0)
    slab = put(slab, "dwo", params["dwo"], params["dbo"], ones_col=None)
    return slab.astype(jnp.bfloat16)


# ----------------------------------------------------------------------------
# Host-side input packing: ONE lane-dense slab [x | 1 | 0 || eps | label | 1 | 0]
# ----------------------------------------------------------------------------
def pack_inputs(x, label, eps, layout, b_pad):
    L = layout
    f32 = jnp.float32
    B = x.shape[0]
    ones = jnp.ones((B, 1), f32)

    x_pieces = [x.astype(f32), ones]
    xpad = L["X_W"] - L["in_dim"] - 1
    if xpad:
        x_pieces.append(jnp.zeros((B, xpad), f32))

    aux_pieces = [eps.astype(f32), label.astype(f32), ones]
    apad = 128 - L["dcat"] - 1
    if apad:
        aux_pieces.append(jnp.zeros((B, apad), f32))

    slab = jnp.concatenate(x_pieces + aux_pieces, axis=-1)
    if b_pad != B:
        slab = jnp.pad(slab, ((0, b_pad - B), (0, 0)))
    return slab


# ----------------------------------------------------------------------------
# Kernel
# ----------------------------------------------------------------------------
def _vae_kernel(layout, xin_ref, w_ref, out_ref):
    f32, bf16 = jnp.float32, jnp.bfloat16
    L = layout
    X_W = L["X_W"]

    def wmat(name):
        off, k, n = L["w"][name]
        return w_ref[off:off + k, :n]            # static, 128-aligned (whole-vreg) slices

    def mm(act, name):
        return jnp.dot(act.astype(bf16), wmat(name), preferred_element_type=f32)

    xin = xin_ref[...]                           # (bt, X_W + 128) f32
    x_blk = xin[:, :X_W]                         # [x | 1 | 0]
    aux = xin[:, X_W:]                           # [eps | label | 1 | 0]  (128 lanes)

    # ---------------- Encoder (biases live in the ones lane; dropout = eval identity) -------
    h = jnp.maximum(mm(x_blk, "ew1"), 0.0)       # [h0 act | 1 | 0]
    h = jnp.maximum(mm(h, "ew2"), 0.0)           # [h1 act | 1 | 0]
    mulv = mm(h, "wmulv")                        # (bt, 256)
    mu_blk = mulv[:, :128]                       # [mu | 0]
    lv_blk = mulv[:, 128:]                       # [logvar | 0]

    # ------------- Reparameterize + torch.cat([z, label], 1), fused into one vector expr ----
    # lanes [0,latent): mu + eps*std ; [latent,dcat): 0 + label*exp(0) = label ;
    # lane dcat: 0 + 1*exp(0) = 1 (ones lane carrying the decoder fc1 bias) ; rest 0.
    std_blk = jnp.exp(0.5 * lv_blk)
    zcat = mu_blk + aux * std_blk

    # ---------------- Decoder ----------------
    d = jnp.maximum(mm(zcat, "dw1"), 0.0)
    d = jnp.maximum(mm(d, "dw2"), 0.0)
    recon_blk = jax.nn.sigmoid(mm(d, "dwo"))     # (bt, R_W)

    # Single lane-dense packed store: [recon block | mu block | logvar block]
    out_ref[...] = jnp.concatenate([recon_blk, mu_blk, lv_blk], axis=-1)


# ----------------------------------------------------------------------------
# Wrapper
# ----------------------------------------------------------------------------
def _pick_bt(batch):
    b8 = _round_up(batch, 8)
    if b8 <= 128:
        return b8                               # single grid step for small batches
    # >= 2 grid steps (so v7x's second TensorCore gets work), <= 512 rows per step
    return min(512, _round_up((b8 + 1) // 2, 8))


def vae_forward(x, label, eps, wslab, *, layout):
    L = layout
    B = x.shape[0]
    bt = _pick_bt(B)
    b_pad = _round_up(B, bt)
    xin = pack_inputs(x, label, eps, L, b_pad)

    kernel = functools.partial(_vae_kernel, L)
    flops = 2 * b_pad * sum(k * n for (_o, k, n) in L["w"].values())
    transcendentals = b_pad * (128 + L["R_W"])            # exp (reparam) + sigmoid
    bytes_accessed = 4 * xin.size + 2 * wslab.size + 4 * b_pad * L["OUT_W"]

    out = pl.pallas_call(
        kernel,
        out_shape=jax.ShapeDtypeStruct((b_pad, L["OUT_W"]), jnp.float32),
        grid_spec=pltpu.PrefetchScalarGridSpec(
            num_scalar_prefetch=0,
            grid=(b_pad // bt,),
            in_specs=[
                pl.BlockSpec((bt, L["IN_W"]), lambda i: (i, 0)),
                pl.BlockSpec(L["w_shape"], lambda i: (0, 0)),   # weight slab stays resident
            ],
            out_specs=pl.BlockSpec((bt, L["OUT_W"]), lambda i: (i, 0)),
        ),
        compiler_params=pltpu.CompilerParams(dimension_semantics=("parallel",)),
        cost_estimate=pl.CostEstimate(
            flops=flops, transcendentals=transcendentals, bytes_accessed=bytes_accessed),
    )(xin, wslab)

    in_dim, latent, R_W = L["in_dim"], L["latent_dim"], L["R_W"]
    recon = out[:B, :in_dim]
    mu = out[:B, R_W:R_W + latent]
    logvar = out[:B, R_W + 128:R_W + 128 + latent]
    # Mirrors the torch module's return: [recon, x, mu, logvar]
    return [recon, x, mu, logvar]


# ----------------------------------------------------------------------------
# Deterministic synthetic weights matching the module's layer shapes
# ----------------------------------------------------------------------------
def init_params(key, in_dim, nb_classes, latent_dim, hidden_dims):
    h0, h1 = hidden_dims
    dcat = latent_dim + nb_classes
    k = iter(jax.random.split(key, 12))

    def w(key, fan_in, fan_out):
        bound = 1.0 / float(fan_in) ** 0.5
        return jax.random.uniform(key, (fan_in, fan_out), jnp.float32, -bound, bound)

    def b(key, fan_in, fan_out):
        bound = 1.0 / float(fan_in) ** 0.5
        return jax.random.uniform(key, (fan_out,), jnp.float32, -bound, bound)

    return {
        "ew1": w(next(k), in_dim, h0), "eb1": b(next(k), in_dim, h0),
        "ew2": w(next(k), h0, h1),     "eb2": b(next(k), h0, h1),
        "wmu": w(next(k), h1, latent_dim), "bmu": b(next(k), h1, latent_dim),
        "wlv": w(next(k), h1, latent_dim), "blv": b(next(k), h1, latent_dim),
        "dw1": w(next(k), dcat, h1), "db1": b(next(k), dcat, h1),
        "dw2": w(next(k), h1, h0),   "db2": b(next(k), h1, h0),
    } | {
        "dwo": w(jax.random.fold_in(key, 101), h0, in_dim),
        "dbo": b(jax.random.fold_in(key, 102), h0, in_dim),
    }


def vae_reference(x, label, eps, params):
    relu = jax.nn.relu
    h = relu(x @ params["ew1"] + params["eb1"])
    h = relu(h @ params["ew2"] + params["eb2"])
    mu = h @ params["wmu"] + params["bmu"]
    logvar = h @ params["wlv"] + params["blv"]
    z = mu + eps * jnp.exp(0.5 * logvar)
    zc = jnp.concatenate([z, label], axis=1)
    d = relu(zc @ params["dw1"] + params["db1"])
    d = relu(d @ params["dw2"] + params["db2"])
    recon = jax.nn.sigmoid(d @ params["dwo"] + params["dbo"])
    return recon, mu, logvar


if __name__ == "__main__":
    # Small, module-consistent shapes.
    in_dim, nb_classes, latent_dim = 32, 4, 8
    hidden_dims = [64, 32]
    seed = 0

    layout = make_layout(in_dim, nb_classes, latent_dim, hidden_dims)
    key = jax.random.PRNGKey(0)
    kparams, kdata = jax.random.split(key)
    params = init_params(kparams, in_dim, nb_classes, latent_dim, hidden_dims)
    wslab = pack_params(params, layout)                    # packed once, host-side

    fwd = jax.jit(functools.partial(vae_forward, layout=layout))

    for B in (8, 12):                                      # B=12 exercises batch padding
        kx, klab = jax.random.split(jax.random.fold_in(kdata, B))
        x = jax.random.uniform(kx, (B, in_dim), jnp.float32)
        label = jax.nn.one_hot(jax.random.randint(klab, (B,), 0, nb_classes),
                               nb_classes, dtype=jnp.float32)
        # Deterministic stand-in for torch.manual_seed(seed); torch.randn_like(std)
        eps = jax.random.normal(jax.random.PRNGKey(seed), (B, latent_dim), jnp.float32)

        recon, x_out, mu, logvar = fwd(x, label, eps, wslab)
        jax.block_until_ready((recon, x_out, mu, logvar))

        r_ref, mu_ref, lv_ref = vae_reference(x, label, eps, params)
        assert recon.shape == (B, in_dim)
        assert mu.shape == (B, latent_dim) and logvar.shape == (B, latent_dim)
        assert bool(jnp.all(jnp.isfinite(recon)))
        assert float(jnp.max(jnp.abs(recon - r_ref))) < 5e-2
        assert float(jnp.max(jnp.abs(mu - mu_ref))) < 5e-2
        assert float(jnp.max(jnp.abs(logvar - lv_ref))) < 5e-2
        assert bool(jnp.all(x_out == x))

    print("KERNEL_OK")
</pallas_src>

<mosaic_0001>
module attributes {stable_mosaic.version = 11 : i64} {
  func.func @_vae_kernel(%arg0: i32, %arg1: memref<8x256xf32, #tpu.memory_space<vmem>>, %arg2: memref<768x256xbf16, #tpu.memory_space<vmem>>, %arg3: memref<8x384xf32, #tpu.memory_space<vmem>>) attributes {dimension_semantics = [#tpu.dimension_semantics<parallel>], iteration_bounds = array<i64: 1>, scalar_prefetch = 0 : i64, scratch_operands = 0 : i64, tpu.core_type = #tpu.core_type<tc>, window_params = [{transform_indices = @transform_0, window_bounds = array<i64: 8, 256>}, {pipeline_mode = #tpu.pipeline_mode<synchronous>, transform_indices = @transform_1, window_bounds = array<i64: 768, 256>}, {transform_indices = @transform_2, window_bounds = array<i64: 8, 384>}]} {
    %c0 = arith.constant 0 : index
    %c0_0 = arith.constant 0 : index
    %0 = vector.load %arg1[%c0, %c0_0] : memref<8x256xf32, #tpu.memory_space<vmem>>, vector<8x256xf32>
    %1 = vector.extract_strided_slice %0 {offsets = [0, 0], sizes = [8, 128], strides = [1, 1]} : vector<8x256xf32> to vector<8x128xf32>
    %2 = vector.extract_strided_slice %0 {offsets = [0, 128], sizes = [8, 128], strides = [1, 1]} : vector<8x256xf32> to vector<8x128xf32>
    %3 = arith.truncf %1 : vector<8x128xf32> to vector<8x128xbf16>
    %c0_1 = arith.constant 0 : index
    %c0_2 = arith.constant 0 : index
    %4 = vector.load %arg2[%c0_1, %c0_2] : memref<768x256xbf16, #tpu.memory_space<vmem>>, vector<128x128xbf16>
    %cst = arith.constant dense<0.000000e+00> : vector<8x128xf32>
    %5 = tpu.matmul %3, %4, %cst {dimension_numbers = #tpu.dot_dimension_numbers<[1], [0], [0], [1], [0, 0, 1, 1], [], []>} : vector<8x128xbf16>, vector<128x128xbf16>, vector<8x128xf32> -> vector<8x128xf32>
    %cst_3 = arith.constant 0.000000e+00 : f32
    %6 = vector.broadcast %cst_3 : f32 to vector<8x128xf32>
    %7 = arith.maximumf %5, %6 : vector<8x128xf32>
    %8 = arith.truncf %7 : vector<8x128xf32> to vector<8x128xbf16>
    %c128 = arith.constant 128 : index
    %c0_4 = arith.constant 0 : index
    %9 = vector.load %arg2[%c128, %c0_4] : memref<768x256xbf16, #tpu.memory_space<vmem>>, vector<128x128xbf16>
    %cst_5 = arith.constant dense<0.000000e+00> : vector<8x128xf32>
    %10 = tpu.matmul %8, %9, %cst_5 {dimension_numbers = #tpu.dot_dimension_numbers<[1], [0], [0], [1], [0, 0, 1, 1], [], []>} : vector<8x128xbf16>, vector<128x128xbf16>, vector<8x128xf32> -> vector<8x128xf32>
    %cst_6 = arith.constant 0.000000e+00 : f32
    %11 = vector.broadcast %cst_6 : f32 to vector<8x128xf32>
    %12 = arith.maximumf %10, %11 : vector<8x128xf32>
    %13 = arith.truncf %12 : vector<8x128xf32> to vector<8x128xbf16>
    %c256 = arith.constant 256 : index
    %c0_7 = arith.constant 0 : index
    %14 = vector.load %arg2[%c256, %c0_7] : memref<768x256xbf16, #tpu.memory_space<vmem>>, vector<128x256xbf16>
    %cst_8 = arith.constant dense<0.000000e+00> : vector<8x256xf32>
    %15 = tpu.matmul %13, %14, %cst_8 {dimension_numbers = #tpu.dot_dimension_numbers<[1], [0], [0], [1], [0, 0, 1, 1], [], []>} : vector<8x128xbf16>, vector<128x256xbf16>, vector<8x256xf32> -> vector<8x256xf32>
    %16 = vector.extract_strided_slice %15 {offsets = [0, 0], sizes = [8, 128], strides = [1, 1]} : vector<8x256xf32> to vector<8x128xf32>
    %17 = vector.extract_strided_slice %15 {offsets = [0, 128], sizes = [8, 128], strides = [1, 1]} : vector<8x256xf32> to vector<8x128xf32>
    %cst_9 = arith.constant 5.000000e-01 : f32
    %18 = vector.broadcast %cst_9 : f32 to vector<8x128xf32>
    %19 = arith.mulf %18, %17 : vector<8x128xf32>
    %20 = math.exp %19 : vector<8x128xf32>
    %21 = arith.mulf %2, %20 : vector<8x128xf32>
    %22 = arith.addf %16, %21 : vector<8x128xf32>
    %23 = arith.truncf %22 : vector<8x128xf32> to vector<8x128xbf16>
    %c384 = arith.constant 384 : index
    %c0_10 = arith.constant 0 : index
    %24 = vector.load %arg2[%c384, %c0_10] : memref<768x256xbf16, #tpu.memory_space<vmem>>, vector<128x128xbf16>
    %cst_11 = arith.constant dense<0.000000e+00> : vector<8x128xf32>
    %25 = tpu.matmul %23, %24, %cst_11 {dimension_numbers = #tpu.dot_dimension_numbers<[1], [0], [0], [1], [0, 0, 1, 1], [], []>} : vector<8x128xbf16>, vector<128x128xbf16>, vector<8x128xf32> -> vector<8x128xf32>
    %cst_12 = arith.constant 0.000000e+00 : f32
    %26 = vector.broadcast %cst_12 : f32 to vector<8x128xf32>
    %27 = arith.maximumf %25, %26 : vector<8x128xf32>
    %28 = arith.truncf %27 : vector<8x128xf32> to vector<8x128xbf16>
    %c512 = arith.constant 512 : index
    %c0_13 = arith.constant 0 : index
    %29 = vector.load %arg2[%c512, %c0_13] : memref<768x256xbf16, #tpu.memory_space<vmem>>, vector<128x128xbf16>
    %cst_14 = arith.constant dense<0.000000e+00> : vector<8x128xf32>
    %30 = tpu.matmul %28, %29, %cst_14 {dimension_numbers = #tpu.dot_dimension_numbers<[1], [0], [0], [1], [0, 0, 1, 1], [], []>} : vector<8x128xbf16>, vector<128x128xbf16>, vector<8x128xf32> -> vector<8x128xf32>
    %cst_15 = arith.constant 0.000000e+00 : f32
    %31 = vector.broadcast %cst_15 : f32 to vector<8x128xf32>
    %32 = arith.maximumf %30, %31 : vector<8x128xf32>
    %33 = arith.truncf %32 : vector<8x128xf32> to vector<8x128xbf16>
    %c640 = arith.constant 640 : index
    %c0_16 = arith.constant 0 : index
    %34 = vector.load %arg2[%c640, %c0_16] : memref<768x256xbf16, #tpu.memory_space<vmem>>, vector<128x128xbf16>
    %cst_17 = arith.constant dense<0.000000e+00> : vector<8x128xf32>
    %35 = tpu.matmul %33, %34, %cst_17 {dimension_numbers = #tpu.dot_dimension_numbers<[1], [0], [0], [1], [0, 0, 1, 1], [], []>} : vector<8x128xbf16>, vector<128x128xbf16>, vector<8x128xf32> -> vector<8x128xf32>
    %36 = arith.negf %35 : vector<8x128xf32>
    %37 = math.exp %36 : vector<8x128xf32>
    %cst_18 = arith.constant 1.000000e+00 : f32
    %38 = vector.broadcast %cst_18 : f32 to vector<8x128xf32>
    %39 = arith.addf %38, %37 : vector<8x128xf32>
    %40 = arith.divf %38, %39 : vector<8x128xf32>
    %41 = tpu.concatenate %40, %16, %17 in 1 : vector<8x128xf32>, vector<8x128xf32>, vector<8x128xf32> -> vector<8x384xf32>
    %c0_19 = arith.constant 0 : index
    %c0_20 = arith.constant 0 : index
    %42 = vector.load %arg3[%c0_19, %c0_20] : memref<8x384xf32, #tpu.memory_space<vmem>>, vector<8x384xf32>
    tpu.vector_store %arg3[%c0_19, %c0_20], %41 {strides = array<i32>} : memref<8x384xf32, #tpu.memory_space<vmem>>, vector<8x384xf32>,
    return
  }
  func.func @transform_0(%arg0: i32) -> (i32, i32) {
    %c0_i32 = arith.constant 0 : i32
    %c0_i32_0 = arith.constant 0 : i32
    return %arg0, %c0_i32 : i32, i32
  }
  func.func @transform_1(%arg0: i32) -> (i32, i32) {
    %c0_i32 = arith.constant 0 : i32
    %c0_i32_0 = arith.constant 0 : i32
    %c0_i32_1 = arith.constant 0 : i32
    return %c0_i32, %c0_i32_0 : i32, i32
  }
  func.func @transform_2(%arg0: i32) -> (i32, i32) {
    %c0_i32 = arith.constant 0 : i32
    %c0_i32_0 = arith.constant 0 : i32
    return %arg0, %c0_i32 : i32, i32
  }
}

</mosaic_0001>

<llo_original>
// kernel: vae_forward.1
$region0: #{vae_forward.1}
  #allocation0 [shape = 'u32[]', space=smem, size = 0x4, offset = 0x4, fixed_abs, tag = 'smem constant byte address 0x4 - core index']
  #allocation1 [shape = 'u32[72,128]{1,0:T(1,128)}', space=vmem, size = 0x9000, scoped, tag = 'internal scratch']
  %s0 = inlined_call_operand.vmem [shape: f32[8,256], index: 0, kind: input, shape index: {}]
  %s1 = inlined_call_operand.hbm [shape: bf16[768,256], index: 1, kind: input, shape index: {}]
  %s2 = inlined_call_operand.vmem [shape: f32[8,384], index: 2, kind: output, shape index: {}]
  %s3 = sld [smem:[#allocation0]]
  $region22: #{vae_forward.1} parent=0
    _
  %s5 = ssub.s32 1, %s3
  %s6 = scalar_select 0, %s5, %s3
  $region1: #{vae_forward.1} parent=0
    #allocation2 [shape = 'u8[393216]{0}', space=vmem, size = 0x60000, scoped, tag = 'input window, operand 1, single buffered']
    #allocation3 [shape = 's32[1]{0}', space=sflag, size = 0x4, scoped, tag = 'scoped memory for vae_forward.1']
    %7 = vsyncpa [#allocation3], 0
    // Predicated region
    $region2: #{vae_forward.1} parent=1 // pred_check
      _
    $region3: #{vae_forward.1} parent=1 // pred_check_branch
      %9 = sbr.rel (0) target = $region5
    $region4: #{vae_forward.1} parent=1 // pred_region
      _
    $region5: #{vae_forward.1} parent=1 // pred_fallthru
      _
    // Predicated region
    $region6: #{vae_forward.1} parent=1 // pred_check
      _
    $region7: #{vae_forward.1} parent=1 // pred_check_branch
      %11 = sbr.rel (0) target = $region9
    $region8: #{vae_forward.1} parent=1 // pred_region
      %13 = vsyncadd [#allocation3], 0
      %s14 = sshll.u32 %s1, 4
      %s15 = int_to_ptr.hbm [resolvable:$true] %s14
      %s16 = sshll.u32 [#allocation2], 4
      %s17 = int_to_ptr.vmem [resolvable:$true] %s16
      %22 = dma.hbm_to_vmem [thread:$0]  %s15, 12288, %s17, [#allocation3], 128, 128, 8
    $region9: #{vae_forward.1} parent=1 // pred_fallthru
      _
    // Predicated region
    $region10: #{vae_forward.1} parent=1 // pred_check
      _
    $region11: #{vae_forward.1} parent=1 // pred_check_branch
      %24 = sbr.rel (0) target = $region13
    $region12: #{vae_forward.1} parent=1 // pred_region
      %26 = dma.done [#allocation3], 12288
    $region13: #{vae_forward.1} parent=1 // pred_fallthru
      _
    %v27 = vld [vmem:[%s0] sm:$0xff]
    %v28 = vld [vmem:[%s0 + $0x8] sm:$0xff]
    %v29 = vpack.c.bf16 %v27, %v27
    %v30 = vld [vmem:[#allocation2] sm:$0xf]
    %v31 = vld [vmem:[#allocation2 + $0x8] sm:$0xf]
    %v32 = vld [vmem:[#allocation2 + $0x10] sm:$0xf]
    %v33 = vld [vmem:[#allocation2 + $0x18] sm:$0xf]
    %v34 = vld [vmem:[#allocation2 + $0x20] sm:$0xf]
    %v35 = vld [vmem:[#allocation2 + $0x28] sm:$0xf]
    %v36 = vld [vmem:[#allocation2 + $0x30] sm:$0xf]
    %v37 = vld [vmem:[#allocation2 + $0x38] sm:$0xf]
    %v38 = vld [vmem:[#allocation2 + $0x40] sm:$0xf]
    %v39 = vld [vmem:[#allocation2 + $0x48] sm:$0xf]
    %v40 = vld [vmem:[#allocation2 + $0x50] sm:$0xf]
    %v41 = vld [vmem:[#allocation2 + $0x58] sm:$0xf]
    %v42 = vld [vmem:[#allocation2 + $0x60] sm:$0xf]
    %v43 = vld [vmem:[#allocation2 + $0x68] sm:$0xf]
    %v44 = vld [vmem:[#allocation2 + $0x70] sm:$0xf]
    %v45 = vld [vmem:[#allocation2 + $0x78] sm:$0xf]
    %v62 = vunpack.c.l.b16 %v30
    %v63 = vunpack.c.l.b16 %v31
    %v64 = vunpack.c.l.b16 %v32
    %v65 = vunpack.c.l.b16 %v33
    %v66 = vunpack.c.l.b16 %v34
    %v67 = vunpack.c.l.b16 %v35
    %v68 = vunpack.c.l.b16 %v36
    %v69 = vunpack.c.l.b16 %v37
    %v70 = vunpack.c.l.b16 %v38
    %v71 = vunpack.c.l.b16 %v39
    %v72 = vunpack.c.l.b16 %v40
    %v73 = vunpack.c.l.b16 %v41
    %v74 = vunpack.c.l.b16 %v42
    %v75 = vunpack.c.l.b16 %v43
    %v76 = vunpack.c.l.b16 %v44
    %v77 = vunpack.c.l.b16 %v45
    %v78 = vpack.c.b16 %v63, %v62
    %v79 = vpack.c.b16 %v65, %v64
    %v80 = vpack.c.b16 %v67, %v66
    %v81 = vpack.c.b16 %v69, %v68
    %v82 = vpack.c.b16 %v71, %v70
    %v83 = vpack.c.b16 %v73, %v72
    %v84 = vpack.c.b16 %v75, %v74
    %v85 = vpack.c.b16 %v77, %v76
    %94 = vmatpush.bf16.msra.mxu0 %v85
    %95 = vmatpush.bf16.msra.mxu0 %v84
    %96 = vmatpush.bf16.msra.mxu0 %v83
    %97 = vmatpush.bf16.msra.mxu0 %v82
    %98 = vmatpush.bf16.msra.mxu0 %v81
    %99 = vmatpush.bf16.msra.mxu0 %v80
    %100 = vmatpush.bf16.msra.mxu0 %v79
    %101 = vmatpush.bf16.msra.mxu0 %v78
    %102 = vmatmul.bf16.gmra.mxu0 %v29
    %v103 = vpop.f32.mrf.mxu0
    %v104 = vadd.f32 0.0, %v103
    %v105 = vpop.f32.mrf.mxu0
    %106 = vdwg.mxu0
    %v107 = vmax.f32 %v104, 0.0
    %v108 = vpack.c.bf16 %v107, %v107
    %v109 = vld [vmem:[#allocation2 + $0x80] sm:$0xf]
    %v110 = vld [vmem:[#allocation2 + $0x88] sm:$0xf]
    %v111 = vld [vmem:[#allocation2 + $0x90] sm:$0xf]
    %v112 = vld [vmem:[#allocation2 + $0x98] sm:$0xf]
    %v113 = vld [vmem:[#allocation2 + $0xa0] sm:$0xf]
    %v114 = vld [vmem:[#allocation2 + $0xa8] sm:$0xf]
    %v115 = vld [vmem:[#allocation2 + $0xb0] sm:$0xf]
    %v116 = vld [vmem:[#allocation2 + $0xb8] sm:$0xf]
    %v117 = vld [vmem:[#allocation2 + $0xc0] sm:$0xf]
    %v118 = vld [vmem:[#allocation2 + $0xc8] sm:$0xf]
    %v119 = vld [vmem:[#allocation2 + $0xd0] sm:$0xf]
    %v120 = vld [vmem:[#allocation2 + $0xd8] sm:$0xf]
    %v121 = vld [vmem:[#allocation2 + $0xe0] sm:$0xf]
    %v122 = vld [vmem:[#allocation2 + $0xe8] sm:$0xf]
    %v123 = vld [vmem:[#allocation2 + $0xf0] sm:$0xf]
    %v124 = vld [vmem:[#allocation2 + $0xf8] sm:$0xf]
    %v141 = vunpack.c.l.b16 %v109
    %v142 = vunpack.c.l.b16 %v110
    %v143 = vunpack.c.l.b16 %v111
    %v144 = vunpack.c.l.b16 %v112
    %v145 = vunpack.c.l.b16 %v113
    %v146 = vunpack.c.l.b16 %v114
    %v147 = vunpack.c.l.b16 %v115
    %v148 = vunpack.c.l.b16 %v116
    %v149 = vunpack.c.l.b16 %v117
    %v150 = vunpack.c.l.b16 %v118
    %v151 = vunpack.c.l.b16 %v119
    %v152 = vunpack.c.l.b16 %v120
    %v153 = vunpack.c.l.b16 %v121
    %v154 = vunpack.c.l.b16 %v122
    %v155 = vunpack.c.l.b16 %v123
    %v156 = vunpack.c.l.b16 %v124
    %v157 = vpack.c.b16 %v142, %v141
    %v158 = vpack.c.b16 %v144, %v143
    %v159 = vpack.c.b16 %v146, %v145
    %v160 = vpack.c.b16 %v148, %v147
    %v161 = vpack.c.b16 %v150, %v149
    %v162 = vpack.c.b16 %v152, %v151
    %v163 = vpack.c.b16 %v154, %v153
    %v164 = vpack.c.b16 %v156, %v155
    %173 = vmatpush.bf16.msra.mxu0 %v164
    %174 = vmatpush.bf16.msra.mxu0 %v163
    %175 = vmatpush.bf16.msra.mxu0 %v162
    %176 = vmatpush.bf16.msra.mxu0 %v161
    %177 = vmatpush.bf16.msra.mxu0 %v160
    %178 = vmatpush.bf16.msra.mxu0 %v159
    %179 = vmatpush.bf16.msra.mxu0 %v158
    %180 = vmatpush.bf16.msra.mxu0 %v157
    %181 = vmatmul.bf16.gmra.mxu0 %v108
    %v182 = vpop.f32.mrf.mxu0
    %v183 = vadd.f32 0.0, %v182
    %v184 = vpop.f32.mrf.mxu0
    %185 = vdwg.mxu0
    %v186 = vmax.f32 %v183, 0.0
    %v187 = vpack.c.bf16 %v186, %v186
    %v188 = vld [vmem:[#allocation2 + $0x100] sm:$0xff]
    %v189 = vld [vmem:[#allocation2 + $0x108] sm:$0xff]
    %v190 = vld [vmem:[#allocation2 + $0x110] sm:$0xff]
    %v191 = vld [vmem:[#allocation2 + $0x118] sm:$0xff]
    %v192 = vld [vmem:[#allocation2 + $0x120] sm:$0xff]
    %v193 = vld [vmem:[#allocation2 + $0x128] sm:$0xff]
    %v194 = vld [vmem:[#allocation2 + $0x130] sm:$0xff]
    %v195 = vld [vmem:[#allocation2 + $0x138] sm:$0xff]
    %v196 = vld [vmem:[#allocation2 + $0x140] sm:$0xff]
    %v197 = vld [vmem:[#allocation2 + $0x148] sm:$0xff]
    %v198 = vld [vmem:[#allocation2 + $0x150] sm:$0xff]
    %v199 = vld [vmem:[#allocation2 + $0x158] sm:$0xff]
    %v200 = vld [vmem:[#allocation2 + $0x160] sm:$0xff]
    %v201 = vld [vmem:[#allocation2 + $0x168] sm:$0xff]
    %v202 = vld [vmem:[#allocation2 + $0x170] sm:$0xff]
    %v203 = vld [vmem:[#allocation2 + $0x178] sm:$0xff]
    %v220 = vunpack.c.l.b16 %v188
    %v221 = vunpack.c.h.b16 %v188
    %v222 = vunpack.c.l.b16 %v189
    %v223 = vunpack.c.h.b16 %v189
    %v224 = vunpack.c.l.b16 %v190
    %v225 = vunpack.c.h.b16 %v190
    %v226 = vunpack.c.l.b16 %v191
    %v227 = vunpack.c.h.b16 %v191
    %v228 = vunpack.c.l.b16 %v192
    %v229 = vunpack.c.h.b16 %v192
    %v230 = vunpack.c.l.b16 %v193
    %v231 = vunpack.c.h.b16 %v193
    %v232 = vunpack.c.l.b16 %v194
    %v233 = vunpack.c.h.b16 %v194
    %v234 = vunpack.c.l.b16 %v195
    %v235 = vunpack.c.h.b16 %v195
    %v236 = vunpack.c.l.b16 %v196
    %v237 = vunpack.c.h.b16 %v196
    %v238 = vunpack.c.l.b16 %v197
    %v239 = vunpack.c.h.b16 %v197
    %v240 = vunpack.c.l.b16 %v198
    %v241 = vunpack.c.h.b16 %v198
    %v242 = vunpack.c.l.b16 %v199
    %v243 = vunpack.c.h.b16 %v199
    %v244 = vunpack.c.l.b16 %v200
    %v245 = vunpack.c.h.b16 %v200
    %v246 = vunpack.c.l.b16 %v201
    %v247 = vunpack.c.h.b16 %v201
    %v248 = vunpack.c.l.b16 %v202
    %v249 = vunpack.c.h.b16 %v202
    %v250 = vunpack.c.l.b16 %v203
    %v251 = vunpack.c.h.b16 %v203
    %v252 = vpack.c.b16 %v222, %v220
    %v253 = vpack.c.b16 %v223, %v221
    %v254 = vpack.c.b16 %v226, %v224
    %v255 = vpack.c.b16 %v227, %v225
    %v256 = vpack.c.b16 %v230, %v228
    %v257 = vpack.c.b16 %v231, %v229
    %v258 = vpack.c.b16 %v234, %v232
    %v259 = vpack.c.b16 %v235, %v233
    %v260 = vpack.c.b16 %v238, %v236
    %v261 = vpack.c.b16 %v239, %v237
    %v262 = vpack.c.b16 %v242, %v240
    %v263 = vpack.c.b16 %v243, %v241
    %v264 = vpack.c.b16 %v246, %v244
    %v265 = vpack.c.b16 %v247, %v245
    %v266 = vpack.c.b16 %v250, %v248
    %v267 = vpack.c.b16 %v251, %v249
    %284 = vmatpush.bf16.msra.mxu0 %v266
    %285 = vmatpush.bf16.msra.mxu0 %v264
    %286 = vmatpush.bf16.msra.mxu0 %v262
    %287 = vmatpush.bf16.msra.mxu0 %v260
    %288 = vmatpush.bf16.msra.mxu0 %v258
    %289 = vmatpush.bf16.msra.mxu0 %v256
    %290 = vmatpush.bf16.msra.mxu0 %v254
    %291 = vmatpush.bf16.msra.mxu0 %v252
    %292 = vmatmul.bf16.gmra.mxu0 %v187
    %v293 = vpop.f32.mrf.mxu0
    %v294 = vadd.f32 0.0, %v293
    %v295 = vpop.f32.mrf.mxu0
    %296 = vdwg.mxu0
    %297 = vmatpush.bf16.msra.mxu0 %v267
    %298 = vmatpush.bf16.msra.mxu0 %v265
    %299 = vmatpush.bf16.msra.mxu0 %v263
    %300 = vmatpush.bf16.msra.mxu0 %v261
    %301 = vmatpush.bf16.msra.mxu0 %v259
    %302 = vmatpush.bf16.msra.mxu0 %v257
    %303 = vmatpush.bf16.msra.mxu0 %v255
    %304 = vmatpush.bf16.msra.mxu0 %v253
    %305 = vmatmul.bf16.gmra.mxu0 %v187
    %v306 = vpop.f32.mrf.mxu0
    %v307 = vadd.f32 0.0, %v306
    %v308 = vpop.f32.mrf.mxu0
    %309 = vdwg.mxu0
    %v310 = vmul.f32 %v307, 0.5
    %v311 = vmul.f32 %v310, 1.442695
    %v312 = vpow.pop %v311
    %v313 = vmul.f32 %v28, %v312
    %v314 = vadd.f32 %v294, %v313
    %v315 = vpack.c.bf16 %v314, %v314
    %v316 = vld [vmem:[#allocation2 + $0x180] sm:$0xf]
    %v317 = vld [vmem:[#allocation2 + $0x188] sm:$0xf]
    %v318 = vld [vmem:[#allocation2 + $0x190] sm:$0xf]
    %v319 = vld [vmem:[#allocation2 + $0x198] sm:$0xf]
    %v320 = vld [vmem:[#allocation2 + $0x1a0] sm:$0xf]
    %v321 = vld [vmem:[#allocation2 + $0x1a8] sm:$0xf]
    %v322 = vld [vmem:[#allocation2 + $0x1b0] sm:$0xf]
    %v323 = vld [vmem:[#allocation2 + $0x1b8] sm:$0xf]
    %v324 = vld [vmem:[#allocation2 + $0x1c0] sm:$0xf]
    %v325 = vld [vmem:[#allocation2 + $0x1c8] sm:$0xf]
    %v326 = vld [vmem:[#allocation2 + $0x1d0] sm:$0xf]
    %v327 = vld [vmem:[#allocation2 + $0x1d8] sm:$0xf]
    %v328 = vld [vmem:[#allocation2 + $0x1e0] sm:$0xf]
    %v329 = vld [vmem:[#allocation2 + $0x1e8] sm:$0xf]
    %v330 = vld [vmem:[#allocation2 + $0x1f0] sm:$0xf]
    %v331 = vld [vmem:[#allocation2 + $0x1f8] sm:$0xf]
    %v348 = vunpack.c.l.b16 %v316
    %v349 = vunpack.c.l.b16 %v317
    %v350 = vunpack.c.l.b16 %v318
    %v351 = vunpack.c.l.b16 %v319
    %v352 = vunpack.c.l.b16 %v320
    %v353 = vunpack.c.l.b16 %v321
    %v354 = vunpack.c.l.b16 %v322
    %v355 = vunpack.c.l.b16 %v323
    %v356 = vunpack.c.l.b16 %v324
    %v357 = vunpack.c.l.b16 %v325
    %v358 = vunpack.c.l.b16 %v326
    %v359 = vunpack.c.l.b16 %v327
    %v360 = vunpack.c.l.b16 %v328
    %v361 = vunpack.c.l.b16 %v329
    %v362 = vunpack.c.l.b16 %v330
    %v363 = vunpack.c.l.b16 %v331
    %v364 = vpack.c.b16 %v349, %v348
    %v365 = vpack.c.b16 %v351, %v350
    %v366 = vpack.c.b16 %v353, %v352
    %v367 = vpack.c.b16 %v355, %v354
    %v368 = vpack.c.b16 %v357, %v356
    %v369 = vpack.c.b16 %v359, %v358
    %v370 = vpack.c.b16 %v361, %v360
    %v371 = vpack.c.b16 %v363, %v362
    %380 = vmatpush.bf16.msra.mxu0 %v371
    %381 = vmatpush.bf16.msra.mxu0 %v370
    %382 = vmatpush.bf16.msra.mxu0 %v369
    %383 = vmatpush.bf16.msra.mxu0 %v368
    %384 = vmatpush.bf16.msra.mxu0 %v367
    %385 = vmatpush.bf16.msra.mxu0 %v366
    %386 = vmatpush.bf16.msra.mxu0 %v365
    %387 = vmatpush.bf16.msra.mxu0 %v364
    %388 = vmatmul.bf16.gmra.mxu0 %v315
    %v389 = vpop.f32.mrf.mxu0
    %v390 = vadd.f32 0.0, %v389
    %v391 = vpop.f32.mrf.mxu0
    %392 = vdwg.mxu0
    %v393 = vmax.f32 %v390, 0.0
    %v394 = vpack.c.bf16 %v393, %v393
    %v395 = vld [vmem:[#allocation2 + $0x200] sm:$0xf]
    %v396 = vld [vmem:[#allocation2 + $0x208] sm:$0xf]
    %v397 = vld [vmem:[#allocation2 + $0x210] sm:$0xf]
    %v398 = vld [vmem:[#allocation2 + $0x218] sm:$0xf]
    %v399 = vld [vmem:[#allocation2 + $0x220] sm:$0xf]
    %v400 = vld [vmem:[#allocation2 + $0x228] sm:$0xf]
    %v401 = vld [vmem:[#allocation2 + $0x230] sm:$0xf]
    %v402 = vld [vmem:[#allocation2 + $0x238] sm:$0xf]
    %v403 = vld [vmem:[#allocation2 + $0x240] sm:$0xf]
    %v404 = vld [vmem:[#allocation2 + $0x248] sm:$0xf]
    %v405 = vld [vmem:[#allocation2 + $0x250] sm:$0xf]
    %v406 = vld [vmem:[#allocation2 + $0x258] sm:$0xf]
    %v407 = vld [vmem:[#allocation2 + $0x260] sm:$0xf]
    %v408 = vld [vmem:[#allocation2 + $0x268] sm:$0xf]
    %v409 = vld [vmem:[#allocation2 + $0x270] sm:$0xf]
    %v410 = vld [vmem:[#allocation2 + $0x278] sm:$0xf]
    %v427 = vunpack.c.l.b16 %v395
    %v428 = vunpack.c.l.b16 %v396
    %v429 = vunpack.c.l.b16 %v397
    %v430 = vunpack.c.l.b16 %v398
    %v431 = vunpack.c.l.b16 %v399
    %v432 = vunpack.c.l.b16 %v400
    %v433 = vunpack.c.l.b16 %v401
    %v434 = vunpack.c.l.b16 %v402
    %v435 = vunpack.c.l.b16 %v403
    %v436 = vunpack.c.l.b16 %v404
    %v437 = vunpack.c.l.b16 %v405
    %v438 = vunpack.c.l.b16 %v406
    %v439 = vunpack.c.l.b16 %v407
    %v440 = vunpack.c.l.b16 %v408
    %v441 = vunpack.c.l.b16 %v409
    %v442 = vunpack.c.l.b16 %v410
    %v443 = vpack.c.b16 %v428, %v427
    %v444 = vpack.c.b16 %v430, %v429
    %v445 = vpack.c.b16 %v432, %v431
    %v446 = vpack.c.b16 %v434, %v433
    %v447 = vpack.c.b16 %v436, %v435
    %v448 = vpack.c.b16 %v438, %v437
    %v449 = vpack.c.b16 %v440, %v439
    %v450 = vpack.c.b16 %v442, %v441
    %459 = vmatpush.bf16.msra.mxu0 %v450
    %460 = vmatpush.bf16.msra.mxu0 %v449
    %461 = vmatpush.bf16.msra.mxu0 %v448
    %462 = vmatpush.bf16.msra.mxu0 %v447
    %463 = vmatpush.bf16.msra.mxu0 %v446
    %464 = vmatpush.bf16.msra.mxu0 %v445
    %465 = vmatpush.bf16.msra.mxu0 %v444
    %466 = vmatpush.bf16.msra.mxu0 %v443
    %467 = vmatmul.bf16.gmra.mxu0 %v394
    %v468 = vpop.f32.mrf.mxu0
    %v469 = vadd.f32 0.0, %v468
    %v470 = vpop.f32.mrf.mxu0
    %471 = vdwg.mxu0
    %v472 = vmax.f32 %v469, 0.0
    %v473 = vpack.c.bf16 %v472, %v472
    %v474 = vld [vmem:[#allocation2 + $0x280] sm:$0xf]
    %v475 = vld [vmem:[#allocation2 + $0x288] sm:$0xf]
    %v476 = vld [vmem:[#allocation2 + $0x290] sm:$0xf]
    %v477 = vld [vmem:[#allocation2 + $0x298] sm:$0xf]
    %v478 = vld [vmem:[#allocation2 + $0x2a0] sm:$0xf]
    %v479 = vld [vmem:[#allocation2 + $0x2a8] sm:$0xf]
    %v480 = vld [vmem:[#allocation2 + $0x2b0] sm:$0xf]
    %v481 = vld [vmem:[#allocation2 + $0x2b8] sm:$0xf]
    %v482 = vld [vmem:[#allocation2 + $0x2c0] sm:$0xf]
    %v483 = vld [vmem:[#allocation2 + $0x2c8] sm:$0xf]
    %v484 = vld [vmem:[#allocation2 + $0x2d0] sm:$0xf]
    %v485 = vld [vmem:[#allocation2 + $0x2d8] sm:$0xf]
    %v486 = vld [vmem:[#allocation2 + $0x2e0] sm:$0xf]
    %v487 = vld [vmem:[#allocation2 + $0x2e8] sm:$0xf]
    %v488 = vld [vmem:[#allocation2 + $0x2f0] sm:$0xf]
    %v489 = vld [vmem:[#allocation2 + $0x2f8] sm:$0xf]
    %v506 = vunpack.c.l.b16 %v474
    %v507 = vunpack.c.l.b16 %v475
    %v508 = vunpack.c.l.b16 %v476
    %v509 = vunpack.c.l.b16 %v477
    %v510 = vunpack.c.l.b16 %v478
    %v511 = vunpack.c.l.b16 %v479
    %v512 = vunpack.c.l.b16 %v480
    %v513 = vunpack.c.l.b16 %v481
    %v514 = vunpack.c.l.b16 %v482
    %v515 = vunpack.c.l.b16 %v483
    %v516 = vunpack.c.l.b16 %v484
    %v517 = vunpack.c.l.b16 %v485
    %v518 = vunpack.c.l.b16 %v486
    %v519 = vunpack.c.l.b16 %v487
    %v520 = vunpack.c.l.b16 %v488
    %v521 = vunpack.c.l.b16 %v489
    %v522 = vpack.c.b16 %v507, %v506
    %v523 = vpack.c.b16 %v509, %v508
    %v524 = vpack.c.b16 %v511, %v510
    %v525 = vpack.c.b16 %v513, %v512
    %v526 = vpack.c.b16 %v515, %v514
    %v527 = vpack.c.b16 %v517, %v516
    %v528 = vpack.c.b16 %v519, %v518
    %v529 = vpack.c.b16 %v521, %v520
    %538 = vmatpush.bf16.msra.mxu0 %v529
    %539 = vmatpush.bf16.msra.mxu0 %v528
    %540 = vmatpush.bf16.msra.mxu0 %v527
    %541 = vmatpush.bf16.msra.mxu0 %v526
    %542 = vmatpush.bf16.msra.mxu0 %v525
    %543 = vmatpush.bf16.msra.mxu0 %v524
    %544 = vmatpush.bf16.msra.mxu0 %v523
    %545 = vmatpush.bf16.msra.mxu0 %v522
    %546 = vmatmul.bf16.gmra.mxu0 %v473
    %v547 = vpop.f32.mrf.mxu0
    %v548 = vadd.f32 0.0, %v547
    %v549 = vpop.f32.mrf.mxu0
    %550 = vdwg.mxu0
    %v551 = vxor.u32 %v548, 2147483648
    %v552 = vmul.f32 %v551, 1.442695
    %v553 = vpow.pop %v552
    %v554 = vadd.f32 %v553, 1.0
    %v555 = vrcp.pop %v554
    %v556 = vmul.f32 %v554, %v555
    %v557 = vsub.f32 1.0, %v556
    %v558 = vmul.f32 %v555, %v557
    %v559 = vadd.f32 %v555, %v558
    %vm560 = vweird.f32 %v554
    %vm561 = vweird.f32 %v555
    %vm562 = vmor %vm560, %vm561
    %v563 = vsel %vm562, %v555, %v559
    %v564 = vand.u32 2147483647, %v554
    %vm565 = vcmp.eq.f32.partialorder %v564, 8.507059e+37
    %v566 = vand.u32 %v554, 2147483648
    %v567 = vor.u32 1.1754944e-38, %v566
    %v568 = vsel %vm565, %v567, %v563
    %v569 = vmul.f32 1.0, %v568
    %570 = vst [vmem:[%s2] sm:$0xff] %v569
    %571 = vst [vmem:[%s2 + $0x8] sm:$0xff] %v294
    %572 = vst [vmem:[%s2 + $0x10] sm:$0xff] %v307
    // Predicated region
    $region14: #{vae_forward.1} parent=1 // pred_check
      _
    $region15: #{vae_forward.1} parent=1 // pred_check_branch
      %574 = sbr.rel (0) target = $region17
    $region16: #{vae_forward.1} parent=1 // pred_region
      _
    $region17: #{vae_forward.1} parent=1 // pred_fallthru
      _
    // Predicated region
    $region18: #{vae_forward.1} parent=1 // pred_check
      _
    $region19: #{vae_forward.1} parent=1 // pred_check_branch
      %576 = sbr.rel (0) target = $region21
    $region20: #{vae_forward.1} parent=1 // pred_region
      _
    $region21: #{vae_forward.1} parent=1 // pred_fallthru
      _
    %577 = vsyncpa [#allocation3], 1

</llo_original>
